<compile_context>
chip_gen: v5e
topology: v5e:2x2
jax: 0.10.0
libtpu: 0.0.40
codegen_flags: <defaults>
</compile_context>

<pallas_src>
import functools

import jax
import jax.numpy as jnp
from jax.experimental import pallas as pl
from jax.experimental.pallas import tpu as pltpu


# ------------------------------- model dims -------------------------------- #
NUM_CLASSES = 10
NPAD = 128                  # lane-dense padded class dim (sliced back to 10)
FEAT_DIM = 2048             # resnest50 pooled feature dim
BOTTLE_DIM = 256
STEM_C = 32                 # resnest50 stem_width
C_IN = 3
KH = KW = 3
STRIDE = 2
PAD = 1
KRAW = KH * KW * C_IN       # 27 im2col contraction rows
KPAD = 32                   # padded contraction dim (lane/MXU friendly)
BOTTLE_NECK = True          # the undefined `bottle_neck` global -> assume True


# ------------------------------ fused kernel ------------------------------- #

def _dsan_fused_kernel(x_ref, stem_w_ref, stem_b_ref, head_w_ref, head_b_ref,
                       out_ref, *, bb, s):
    """One grid step = `bb` batch elements: stem conv + ReLU + GAP + folded head.

    x_ref: (bb*s, KPAD) bf16 im2col rows (s = oh*ow spatial positions/element).
    Writes this step's own (bb, NPAD) logits block (lane-dense, unmasked).
    """
    # ---- 3x3 / stride-2 stem conv as ONE K-concatenated MXU matmul ----
    conv = jnp.dot(x_ref[...], stem_w_ref[...],
                   preferred_element_type=jnp.float32)          # (bb*s, 32) f32
    h = jnp.maximum(conv + stem_b_ref[...], 0.0)                # bias + ReLU

    # ---- fused global-average-pool within the block (no cross-step scratch) --
    pooled = h.reshape(bb, s, STEM_C).sum(axis=1) * (1.0 / s)   # (bb, 32) f32

    # ---- folded head: proj -> bottle -> cls collapsed to one (32,128) matmul -
    logits = jnp.dot(pooled.astype(jnp.bfloat16), head_w_ref[...],
                     preferred_element_type=jnp.float32) + head_b_ref[...]
    out_ref[...] = logits.astype(out_ref.dtype)                 # (bb, NPAD)


# ------------------------------ wrapper / glue ------------------------------ #

def _im2col_stride2(x_nchw, oh, ow):
    """NCHW -> padded NHWC -> (B*S, KPAD) bf16 im2col rows (taps-major, K padded).

    Cheap layout plumbing only (~54 KiB/batch at 16x16); presents a lane-dense
    unmasked DMA block to the kernel instead of (.., 3)-wide parity planes.
    """
    B = x_nchw.shape[0]
    x = jnp.transpose(x_nchw, (0, 2, 3, 1))                     # NHWC
    xp = jnp.pad(x, ((0, 0), (PAD, PAD), (PAD, PAD), (0, 0)))
    taps = [xp[:, ki:ki + STRIDE * oh:STRIDE, kj:kj + STRIDE * ow:STRIDE, :]
            for ki in range(KH) for kj in range(KW)]            # 9 x (B,oh,ow,C)
    patches = jnp.stack(taps, axis=3)                           # (B,oh,ow,9,C)
    patches = patches.reshape(B, oh * ow, KRAW)
    patches = jnp.pad(patches, ((0, 0), (0, 0), (0, KPAD - KRAW)))
    return patches.reshape(B * oh * ow, KPAD).astype(jnp.bfloat16)


def _pick_bb(B, s):
    """Batch-block size: one independent grid step per block of bb elements."""
    if B <= 8 or B % 8 != 0:
        return B                      # single full block (block == full array)
    bb = 8                            # keep out-block sublane dim 8-aligned
    while bb * 2 <= B and B % (bb * 2) == 0 and bb * s < 1024:
        bb *= 2                       # grow until MXU M is comfortably filled
    return bb


def dsan_heads_fused(prep, source):
    """feature_layers (stand-in) + bottle + cls_fc in one fused Pallas kernel."""
    B, C, H, W = source.shape
    assert C == C_IN, "stand-in stem expects 3 input channels"
    oh = (H + 2 * PAD - KH) // STRIDE + 1
    ow = (W + 2 * PAD - KW) // STRIDE + 1
    s = oh * ow

    x = _im2col_stride2(source, oh, ow)                         # (B*S, KPAD) bf16

    bb = _pick_bb(B, s)
    grid = (B // bb,)

    kernel = functools.partial(_dsan_fused_kernel, bb=bb, s=s)

    args = (x, prep["stem_w"], prep["stem_b"], prep["head_w"], prep["head_b"])
    flops = 2 * B * s * KPAD * STEM_C + 2 * B * STEM_C * NPAD
    bytes_accessed = sum(int(a.size) * a.dtype.itemsize for a in args) \
        + B * NPAD * 4

    logits_padded = pl.pallas_call(
        kernel,
        out_shape=jax.ShapeDtypeStruct((B, NPAD), jnp.float32),
        grid_spec=pltpu.PrefetchScalarGridSpec(
            num_scalar_prefetch=0,
            grid=grid,
            in_specs=[
                # per-step im2col rows (block index i -> rows i*bb*s ...)
                pl.BlockSpec((bb * s, KPAD), lambda i: (i, 0)),
                # weights/biases: full-array blocks, resident across the grid
                pl.BlockSpec((KPAD, STEM_C), lambda i: (0, 0)),
                pl.BlockSpec((1, STEM_C), lambda i: (0, 0)),
                pl.BlockSpec((STEM_C, NPAD), lambda i: (0, 0)),
                pl.BlockSpec((1, NPAD), lambda i: (0, 0)),
            ],
            out_specs=pl.BlockSpec((bb, NPAD), lambda i: (i, 0)),
        ),
        compiler_params=pltpu.CompilerParams(
            # Every grid step is fully independent -> safe to shard across
            # TensorCores (v7x megacore); no-op on v5e/v6e.
            dimension_semantics=("parallel",),
            vmem_limit_bytes=4 * 1024 * 1024,
        ),
        cost_estimate=pl.CostEstimate(flops=flops, transcendentals=0,
                                      bytes_accessed=bytes_accessed),
    )(*args)

    return logits_padded[:, :NUM_CLASSES]


# --------------------------------- DSAN model ------------------------------- #

def init_params(key):
    """f32 master params, laid out like the PyTorch module."""
    ks = jax.random.split(key, 8)
    scale = lambda fan_in: 1.0 / jnp.sqrt(jnp.float32(fan_in))
    return {
        # stem conv weights stored per-tap: (KH*KW, C_in, C_out)
        "stem_w": jax.random.normal(ks[0], (KH * KW, C_IN, STEM_C), jnp.float32)
                  * scale(KH * KW * C_IN),
        "stem_b": jax.random.normal(ks[1], (1, STEM_C), jnp.float32) * 0.01,
        # projection to 2048-d "resnest features"
        "proj_w": jax.random.normal(ks[2], (STEM_C, FEAT_DIM), jnp.float32)
                  * scale(STEM_C),
        "proj_b": jax.random.normal(ks[3], (1, FEAT_DIM), jnp.float32) * 0.01,
        # bottle: Linear(2048, 256)
        "bottle_w": jax.random.normal(ks[4], (FEAT_DIM, BOTTLE_DIM), jnp.float32)
                    * scale(FEAT_DIM),
        "bottle_b": jax.random.normal(ks[5], (1, BOTTLE_DIM), jnp.float32) * 0.01,
        # cls_fc: Linear(256, num_classes)
        "cls_w": jax.random.normal(ks[6], (BOTTLE_DIM, NUM_CLASSES), jnp.float32)
                 * scale(BOTTLE_DIM),
        "cls_b": jax.random.normal(ks[7], (1, NUM_CLASSES), jnp.float32) * 0.01,
    }


def prepare_params(params):
    """ONE-TIME weight prep (hoisted out of the forward pass).

    * Stem weight reshaped to the (KPAD, 32) im2col layout, zero-padded, bf16.
    * The linear post-GAP chain proj->bottle->cls is folded in f32 into a
      single (32, NPAD) matrix + (1, NPAD) bias (class dim pre-padded to 128).
    """
    stem_w = params["stem_w"].reshape(KRAW, STEM_C)
    stem_w = jnp.pad(stem_w, ((0, KPAD - KRAW), (0, 0))).astype(jnp.bfloat16)

    cls_w_pad = jnp.zeros((BOTTLE_DIM, NPAD), jnp.float32)\
        .at[:, :NUM_CLASSES].set(params["cls_w"])
    cls_b_pad = jnp.zeros((1, NPAD), jnp.float32)\
        .at[:, :NUM_CLASSES].set(params["cls_b"])

    head_w = params["proj_w"] @ params["bottle_w"] @ cls_w_pad          # (32,128)
    head_b = (params["proj_b"] @ params["bottle_w"] + params["bottle_b"]) \
        @ cls_w_pad + cls_b_pad                                         # (1,128)

    return {
        "stem_w": stem_w,                               # (KPAD, 32) bf16
        "stem_b": params["stem_b"].astype(jnp.float32), # (1, 32) f32
        "head_w": head_w.astype(jnp.bfloat16),          # (32, NPAD) bf16
        "head_b": head_b.astype(jnp.float32),           # (1, NPAD) f32
    }


@functools.partial(jax.jit, static_argnames=("training",))
def dsan_forward(prep_params, source, target, s_label, training=False):
    # feature_layers -> bottle -> cls_fc, all fused in one Pallas kernel.
    s_pred = dsan_heads_fused(prep_params, source)

    if training:
        # TODO(synk): mmd.lmmd (local MMD) loss source not provided; training
        # branch is not reproduced here. Eval mode below matches exactly.
        loss = jnp.float32(0.0)
    else:
        loss = jnp.float32(0.0)
    return s_pred, loss


# ----------------------------------- main ----------------------------------- #

if __name__ == "__main__":
    key = jax.random.PRNGKey(0)
    k_param, k_src, k_tgt, k_lbl = jax.random.split(key, 4)

    params = init_params(k_param)
    prep_params = prepare_params(params)        # one-time fold / cast / pad

    B, C, H, W = 2, 3, 16, 16
    source = jax.random.normal(k_src, (B, C, H, W), jnp.float32)
    target = jax.random.normal(k_tgt, (B, C, H, W), jnp.float32)
    s_label = jax.random.randint(k_lbl, (B,), 0, NUM_CLASSES)

    s_pred, loss = dsan_forward(prep_params, source, target, s_label,
                                training=False)
    s_pred = jax.block_until_ready(s_pred)
    loss = jax.block_until_ready(loss)

    assert s_pred.shape == (B, NUM_CLASSES)
    assert s_pred.dtype == jnp.float32
    print("KERNEL_OK")
</pallas_src>

<mosaic_0001>
module attributes {stable_mosaic.version = 11 : i64} {
  func.func @_dsan_fused_kernel(%arg0: i32, %arg1: memref<128x32xbf16, #tpu.memory_space<vmem>>, %arg2: memref<32x32xbf16, #tpu.memory_space<vmem>>, %arg3: memref<1x32xf32, #tpu.memory_space<vmem>>, %arg4: memref<32x128xbf16, #tpu.memory_space<vmem>>, %arg5: memref<1x128xf32, #tpu.memory_space<vmem>>, %arg6: memref<2x128xf32, #tpu.memory_space<vmem>>) attributes {dimension_semantics = [#tpu.dimension_semantics<parallel>], iteration_bounds = array<i64: 1>, scalar_prefetch = 0 : i64, scratch_operands = 0 : i64, tpu.core_type = #tpu.core_type<tc>, window_params = [{transform_indices = @transform_0, window_bounds = array<i64: 128, 32>}, {pipeline_mode = #tpu.pipeline_mode<synchronous>, transform_indices = @transform_1, window_bounds = array<i64: 32, 32>}, {pipeline_mode = #tpu.pipeline_mode<synchronous>, transform_indices = @transform_2, window_bounds = array<i64: 1, 32>}, {pipeline_mode = #tpu.pipeline_mode<synchronous>, transform_indices = @transform_3, window_bounds = array<i64: 32, 128>}, {pipeline_mode = #tpu.pipeline_mode<synchronous>, transform_indices = @transform_4, window_bounds = array<i64: 1, 128>}, {transform_indices = @transform_5, window_bounds = array<i64: 2, 128>}]} {
    %c0 = arith.constant 0 : index
    %c0_0 = arith.constant 0 : index
    %0 = vector.load %arg1[%c0, %c0_0] : memref<128x32xbf16, #tpu.memory_space<vmem>>, vector<128x32xbf16>
    %c0_1 = arith.constant 0 : index
    %c0_2 = arith.constant 0 : index
    %1 = vector.load %arg2[%c0_1, %c0_2] : memref<32x32xbf16, #tpu.memory_space<vmem>>, vector<32x32xbf16>
    %cst = arith.constant dense<0.000000e+00> : vector<128x32xf32>
    %2 = tpu.matmul %0, %1, %cst {dimension_numbers = #tpu.dot_dimension_numbers<[1], [0], [0], [1], [0, 0, 1, 1], [], []>} : vector<128x32xbf16>, vector<32x32xbf16>, vector<128x32xf32> -> vector<128x32xf32>
    %c0_3 = arith.constant 0 : index
    %c0_4 = arith.constant 0 : index
    %3 = vector.load %arg3[%c0_3, %c0_4] : memref<1x32xf32, #tpu.memory_space<vmem>>, vector<1x32xf32>
    %4 = vector.broadcast %3 : vector<1x32xf32> to vector<128x32xf32>
    %5 = arith.addf %2, %4 : vector<128x32xf32>
    %cst_5 = arith.constant 0.000000e+00 : f32
    %6 = vector.broadcast %cst_5 : f32 to vector<128x32xf32>
    %7 = arith.maximumf %5, %6 : vector<128x32xf32>
    %8 = vector.shape_cast %7 : vector<128x32xf32> to vector<2x64x32xf32>
    %cst_6 = arith.constant dense<0.000000e+00> : vector<2x32xf32>
    %9 = vector.multi_reduction <add>, %8, %cst_6 [1] : vector<2x64x32xf32> to vector<2x32xf32>
    %cst_7 = arith.constant 1.562500e-02 : f32
    %10 = vector.broadcast %cst_7 : f32 to vector<2x32xf32>
    %11 = arith.mulf %9, %10 : vector<2x32xf32>
    %12 = arith.truncf %11 : vector<2x32xf32> to vector<2x32xbf16>
    %c0_8 = arith.constant 0 : index
    %c0_9 = arith.constant 0 : index
    %13 = vector.load %arg4[%c0_8, %c0_9] : memref<32x128xbf16, #tpu.memory_space<vmem>>, vector<32x128xbf16>
    %cst_10 = arith.constant dense<0.000000e+00> : vector<2x128xf32>
    %14 = tpu.matmul %12, %13, %cst_10 {dimension_numbers = #tpu.dot_dimension_numbers<[1], [0], [0], [1], [0, 0, 1, 1], [], []>} : vector<2x32xbf16>, vector<32x128xbf16>, vector<2x128xf32> -> vector<2x128xf32>
    %c0_11 = arith.constant 0 : index
    %c0_12 = arith.constant 0 : index
    %15 = vector.load %arg5[%c0_11, %c0_12] : memref<1x128xf32, #tpu.memory_space<vmem>>, vector<1x128xf32>
    %16 = vector.broadcast %15 : vector<1x128xf32> to vector<2x128xf32>
    %17 = arith.addf %14, %16 : vector<2x128xf32>
    %c0_13 = arith.constant 0 : index
    %c0_14 = arith.constant 0 : index
    %18 = vector.load %arg6[%c0_13, %c0_14] : memref<2x128xf32, #tpu.memory_space<vmem>>, vector<2x128xf32>
    tpu.vector_store %arg6[%c0_13, %c0_14], %17 {strides = array<i32>} : memref<2x128xf32, #tpu.memory_space<vmem>>, vector<2x128xf32>,
    return
  }
  func.func @transform_0(%arg0: i32) -> (i32, i32) {
    %c0_i32 = arith.constant 0 : i32
    %c0_i32_0 = arith.constant 0 : i32
    return %arg0, %c0_i32 : i32, i32
  }
  func.func @transform_1(%arg0: i32) -> (i32, i32) {
    %c0_i32 = arith.constant 0 : i32
    %c0_i32_0 = arith.constant 0 : i32
    %c0_i32_1 = arith.constant 0 : i32
    return %c0_i32, %c0_i32_0 : i32, i32
  }
  func.func @transform_2(%arg0: i32) -> (i32, i32) {
    %c0_i32 = arith.constant 0 : i32
    %c0_i32_0 = arith.constant 0 : i32
    %c0_i32_1 = arith.constant 0 : i32
    return %c0_i32, %c0_i32_0 : i32, i32
  }
  func.func @transform_3(%arg0: i32) -> (i32, i32) {
    %c0_i32 = arith.constant 0 : i32
    %c0_i32_0 = arith.constant 0 : i32
    %c0_i32_1 = arith.constant 0 : i32
    return %c0_i32, %c0_i32_0 : i32, i32
  }
  func.func @transform_4(%arg0: i32) -> (i32, i32) {
    %c0_i32 = arith.constant 0 : i32
    %c0_i32_0 = arith.constant 0 : i32
    %c0_i32_1 = arith.constant 0 : i32
    return %c0_i32, %c0_i32_0 : i32, i32
  }
  func.func @transform_5(%arg0: i32) -> (i32, i32) {
    %c0_i32 = arith.constant 0 : i32
    %c0_i32_0 = arith.constant 0 : i32
    return %arg0, %c0_i32 : i32, i32
  }
}

</mosaic_0001>

<llo_original>
// kernel: dsan_forward.1
$region0: #{dsan_forward.1}
  #allocation0 [shape = 'u32[]', space=smem, size = 0x4, offset = 0x4, fixed_abs, tag = 'smem constant byte address 0x4 - core index']
  #allocation1 [shape = 'u32[72,128]{1,0:T(1,128)}', space=vmem, size = 0x9000, scoped, tag = 'internal scratch']
  %s0 = inlined_call_operand.vmem [shape: bf16[128,32], index: 0, kind: input, shape index: {}]
  %s1 = inlined_call_operand.vmem [shape: bf16[32,32], index: 1, kind: input, shape index: {}]
  %s2 = inlined_call_operand.vmem [shape: f32[1,32], index: 2, kind: input, shape index: {}]
  %s3 = inlined_call_operand.vmem [shape: bf16[32,128], index: 3, kind: input, shape index: {}]
  %s4 = inlined_call_operand.vmem [shape: f32[1,128], index: 4, kind: input, shape index: {}]
  %s5 = inlined_call_operand.hbm [shape: f32[2,128], index: 5, kind: output, shape index: {}]
  %s6 = sld [smem:[#allocation0]]
  $region30: #{dsan_forward.1} parent=0
    _
  %s8 = ssub.s32 1, %s6
  %s9 = scalar_select 0, %s8, %s6
  $region1: #{dsan_forward.1} parent=0
    #allocation2 [shape = 'u8[1024]{0}', space=vmem, size = 0x400, scoped, tag = 'output window, operand 0, single buffered']
    #allocation3 [shape = 's32[1]{0}', space=sflag, size = 0x4, scoped, tag = 'scoped memory for dsan_forward.1']
    %10 = vsyncpa [#allocation3], 0
    // Predicated region
    $region2: #{dsan_forward.1} parent=1 // pred_check
      _
    $region3: #{dsan_forward.1} parent=1 // pred_check_branch
      %12 = sbr.rel (0) target = $region5
    $region4: #{dsan_forward.1} parent=1 // pred_region
      _
    $region5: #{dsan_forward.1} parent=1 // pred_fallthru
      _
    // Predicated region
    $region6: #{dsan_forward.1} parent=1 // pred_check
      _
    $region7: #{dsan_forward.1} parent=1 // pred_check_branch
      %14 = sbr.rel (0) target = $region9
    $region8: #{dsan_forward.1} parent=1 // pred_region
      _
    $region9: #{dsan_forward.1} parent=1 // pred_fallthru
      _
    // Predicated region
    $region10: #{dsan_forward.1} parent=1 // pred_check
      _
    $region11: #{dsan_forward.1} parent=1 // pred_check_branch
      %16 = sbr.rel (0) target = $region13
    $region12: #{dsan_forward.1} parent=1 // pred_region
      _
    $region13: #{dsan_forward.1} parent=1 // pred_fallthru
      _
    // Predicated region
    $region14: #{dsan_forward.1} parent=1 // pred_check
      _
    $region15: #{dsan_forward.1} parent=1 // pred_check_branch
      %18 = sbr.rel (0) target = $region17
    $region16: #{dsan_forward.1} parent=1 // pred_region
      _
    $region17: #{dsan_forward.1} parent=1 // pred_fallthru
      _
    // Predicated region
    $region18: #{dsan_forward.1} parent=1 // pred_check
      _
    $region19: #{dsan_forward.1} parent=1 // pred_check_branch
      %20 = sbr.rel (0) target = $region21
    $region20: #{dsan_forward.1} parent=1 // pred_region
      _
    $region21: #{dsan_forward.1} parent=1 // pred_fallthru
      _
    %v22 = vld [vmem:[%s0] sm:$0xf]
    %v23 = vld [vmem:[%s0 + $0x4] sm:$0xf]
    %v24 = vld [vmem:[%s0 + $0x8] sm:$0xf]
    %v25 = vld [vmem:[%s0 + $0xc] sm:$0xf]
    %v26 = vld [vmem:[%s0 + $0x10] sm:$0xf]
    %v27 = vld [vmem:[%s0 + $0x14] sm:$0xf]
    %v28 = vld [vmem:[%s0 + $0x18] sm:$0xf]
    %v29 = vld [vmem:[%s0 + $0x1c] sm:$0xf]
    %v30 = vld [vmem:[%s0 + $0x20] sm:$0xf]
    %v31 = vld [vmem:[%s0 + $0x24] sm:$0xf]
    %v32 = vld [vmem:[%s0 + $0x28] sm:$0xf]
    %v33 = vld [vmem:[%s0 + $0x2c] sm:$0xf]
    %v34 = vld [vmem:[%s0 + $0x30] sm:$0xf]
    %v35 = vld [vmem:[%s0 + $0x34] sm:$0xf]
    %v36 = vld [vmem:[%s0 + $0x38] sm:$0xf]
    %v37 = vld [vmem:[%s0 + $0x3c] sm:$0xf]
    %v38 = vld [vmem:[%s1] sm:$0xf]
    %v39 = vld [vmem:[%s1 + $0x4] sm:$0xf]
    %v40 = vld [vmem:[%s1 + $0x8] sm:$0xf]
    %v41 = vld [vmem:[%s1 + $0xc] sm:$0xf]
    %v42 = vld [vmem:[%s2] sm:$0x1]
    %v44 = vperm.slane %v42, 0
    %v62 = vunpack.c.l.b16 %v22
    %v63 = vunpack.c.l.b16 %v23
    %v64 = vunpack.c.l.b16 %v24
    %v65 = vunpack.c.l.b16 %v25
    %v66 = vunpack.c.l.b16 %v26
    %v67 = vunpack.c.l.b16 %v27
    %v68 = vunpack.c.l.b16 %v28
    %v69 = vunpack.c.l.b16 %v29
    %v70 = vunpack.c.l.b16 %v30
    %v71 = vunpack.c.l.b16 %v31
    %v72 = vunpack.c.l.b16 %v32
    %v73 = vunpack.c.l.b16 %v33
    %v74 = vunpack.c.l.b16 %v34
    %v75 = vunpack.c.l.b16 %v35
    %v76 = vunpack.c.l.b16 %v36
    %v77 = vunpack.c.l.b16 %v37
    %v78 = vpack.c.b16 %v63, %v62
    %v79 = vpack.c.b16 %v65, %v64
    %v80 = vpack.c.b16 %v67, %v66
    %v81 = vpack.c.b16 %v69, %v68
    %v82 = vpack.c.b16 %v71, %v70
    %v83 = vpack.c.b16 %v73, %v72
    %v84 = vpack.c.b16 %v75, %v74
    %v85 = vpack.c.b16 %v77, %v76
    %v90 = vunpack.c.l.b16 %v38
    %v91 = vunpack.c.l.b16 %v39
    %v92 = vunpack.c.l.b16 %v40
    %v93 = vunpack.c.l.b16 %v41
    %v94 = vpack.c.b16 %v91, %v90
    %v95 = vpack.c.b16 %v93, %v92
    %vm98 = vcmask 261120
    %v100 = vsel %vm98, %v78, 0
    %v103 = vsel %vm98, %v79, 0
    %v106 = vsel %vm98, %v80, 0
    %v109 = vsel %vm98, %v81, 0
    %v112 = vsel %vm98, %v82, 0
    %v115 = vsel %vm98, %v83, 0
    %v118 = vsel %vm98, %v84, 0
    %v121 = vsel %vm98, %v85, 0
    %123 = vmatpush.bf16.msra.mxu0 0
    %124 = vmatpush.bf16.msra.mxu0 0
    %125 = vmatpush.bf16.msra.mxu0 0
    %126 = vmatpush.bf16.msra.mxu0 0
    %127 = vmatpush.bf16.msra.mxu0 0
    %128 = vmatpush.bf16.msra.mxu0 0
    %129 = vmatpush.bf16.msra.mxu0 %v95
    %130 = vmatpush.bf16.msra.mxu0 %v94
    %131 = vmatmul.bf16.gmra.mxu0 %v100
    %v132 = vpop.f32.mrf.mxu0
    %v133 = vadd.f32 %v44, %v132
    %v134 = vpop.f32.mrf.mxu0
    %v135 = vadd.f32 %v44, %v134
    %136 = vmatmul.bf16.gmra.mxu0 %v103
    %v137 = vpop.f32.mrf.mxu0
    %v138 = vadd.f32 %v44, %v137
    %v139 = vpop.f32.mrf.mxu0
    %v140 = vadd.f32 %v44, %v139
    %141 = vmatmul.bf16.gmra.mxu0 %v106
    %v142 = vpop.f32.mrf.mxu0
    %v143 = vadd.f32 %v44, %v142
    %v144 = vpop.f32.mrf.mxu0
    %v145 = vadd.f32 %v44, %v144
    %146 = vmatmul.bf16.gmra.mxu0 %v109
    %v147 = vpop.f32.mrf.mxu0
    %v148 = vadd.f32 %v44, %v147
    %v149 = vpop.f32.mrf.mxu0
    %v150 = vadd.f32 %v44, %v149
    %151 = vmatmul.bf16.gmra.mxu0 %v112
    %v152 = vpop.f32.mrf.mxu0
    %v153 = vadd.f32 %v44, %v152
    %v154 = vpop.f32.mrf.mxu0
    %v155 = vadd.f32 %v44, %v154
    %156 = vmatmul.bf16.gmra.mxu0 %v115
    %v157 = vpop.f32.mrf.mxu0
    %v158 = vadd.f32 %v44, %v157
    %v159 = vpop.f32.mrf.mxu0
    %v160 = vadd.f32 %v44, %v159
    %161 = vmatmul.bf16.gmra.mxu0 %v118
    %v162 = vpop.f32.mrf.mxu0
    %v163 = vadd.f32 %v44, %v162
    %v164 = vpop.f32.mrf.mxu0
    %v165 = vadd.f32 %v44, %v164
    %166 = vmatmul.bf16.gmra.mxu0 %v121
    %v167 = vpop.f32.mrf.mxu0
    %v168 = vadd.f32 %v44, %v167
    %v169 = vpop.f32.mrf.mxu0
    %v170 = vadd.f32 %v44, %v169
    %171 = vdwg.mxu0
    %v172 = vmax.f32 %v133, 0.0
    %v173 = vmax.f32 %v135, 0.0
    %v174 = vmax.f32 %v138, 0.0
    %v175 = vmax.f32 %v140, 0.0
    %v176 = vmax.f32 %v143, 0.0
    %v177 = vmax.f32 %v145, 0.0
    %v178 = vmax.f32 %v148, 0.0
    %v179 = vmax.f32 %v150, 0.0
    %v180 = vmax.f32 %v153, 0.0
    %v181 = vmax.f32 %v155, 0.0
    %v182 = vmax.f32 %v158, 0.0
    %v183 = vmax.f32 %v160, 0.0
    %v184 = vmax.f32 %v163, 0.0
    %v185 = vmax.f32 %v165, 0.0
    %v186 = vmax.f32 %v168, 0.0
    %v187 = vmax.f32 %v170, 0.0
    %v188 = vsel %vm98, %v172, 0.0
    %v189 = vsel %vm98, %v173, 0.0
    %v190 = vadd.f32 %v188, %v189
    %v191 = vsel %vm98, %v174, 0.0
    %v192 = vadd.f32 %v190, %v191
    %v193 = vsel %vm98, %v175, 0.0
    %v194 = vadd.f32 %v192, %v193
    %v195 = vsel %vm98, %v176, 0.0
    %v196 = vadd.f32 %v194, %v195
    %v197 = vsel %vm98, %v177, 0.0
    %v198 = vadd.f32 %v196, %v197
    %v199 = vsel %vm98, %v178, 0.0
    %v200 = vadd.f32 %v198, %v199
    %v201 = vsel %vm98, %v179, 0.0
    %v202 = vadd.f32 %v200, %v201
    %v203 = vrot.slane %v202, 4
    %v204 = vadd.f32 %v202, %v203
    %v205 = vrot.slane %v204, 2
    %v206 = vadd.f32 %v204, %v205
    %v207 = vrot.slane %v206, 1
    %v208 = vadd.f32 %v206, %v207
    %v209 = vsel %vm98, %v180, 0.0
    %v210 = vsel %vm98, %v181, 0.0
    %v211 = vadd.f32 %v209, %v210
    %v212 = vsel %vm98, %v182, 0.0
    %v213 = vadd.f32 %v211, %v212
    %v214 = vsel %vm98, %v183, 0.0
    %v215 = vadd.f32 %v213, %v214
    %v216 = vsel %vm98, %v184, 0.0
    %v217 = vadd.f32 %v215, %v216
    %v218 = vsel %vm98, %v185, 0.0
    %v219 = vadd.f32 %v217, %v218
    %v220 = vsel %vm98, %v186, 0.0
    %v221 = vadd.f32 %v219, %v220
    %v222 = vsel %vm98, %v187, 0.0
    %v223 = vadd.f32 %v221, %v222
    %v224 = vrot.slane %v223, 4
    %v225 = vadd.f32 %v223, %v224
    %v226 = vrot.slane %v225, 2
    %v227 = vadd.f32 %v225, %v226
    %v228 = vrot.slane %v227, 1
    %v229 = vadd.f32 %v227, %v228
    %v230 = vmul.f32 %v208, 0.015625
    %v231 = vmul.f32 %v229, 0.015625
    %v232 = vpack.c.bf16 %v230, %v230
    %v233 = vpack.c.bf16 %v231, %v231
    %v234 = vld [vmem:[%s3] sm:$0xf]
    %v235 = vld [vmem:[%s3 + $0x4] sm:$0xf]
    %v236 = vld [vmem:[%s3 + $0x8] sm:$0xf]
    %v237 = vld [vmem:[%s3 + $0xc] sm:$0xf]
    %v238 = vld [vmem:[%s4] sm:$0x1]
    %v240 = vperm.slane %v238, 0
    %v244 = vunpack.c.l.b16 %v232
    %v245 = vunpack.c.l.b16 %v233
    %vm246 = vcmask 1041409
    %v247 = vsel %vm246, %v245, %v244
    %v248 = vpack.c.b16 %v247, %v247
    %v253 = vunpack.c.l.b16 %v234
    %v254 = vunpack.c.l.b16 %v235
    %v255 = vunpack.c.l.b16 %v236
    %v256 = vunpack.c.l.b16 %v237
    %v257 = vpack.c.b16 %v254, %v253
    %v258 = vpack.c.b16 %v256, %v255
    %v262 = vsel %vm98, %v248, 0
    %264 = vmatpush.bf16.msra.mxu0 0
    %265 = vmatpush.bf16.msra.mxu0 0
    %266 = vmatpush.bf16.msra.mxu0 0
    %267 = vmatpush.bf16.msra.mxu0 0
    %268 = vmatpush.bf16.msra.mxu0 0
    %269 = vmatpush.bf16.msra.mxu0 0
    %270 = vmatpush.bf16.msra.mxu0 %v258
    %271 = vmatpush.bf16.msra.mxu0 %v257
    %272 = vmatmul.bf16.gmra.mxu0 %v262
    %v273 = vpop.f32.mrf.mxu0
    %v274 = vadd.f32 %v240, %v273
    %v275 = vpop.f32.mrf.mxu0
    %276 = vdwg.mxu0
    %277 = vst [vmem:[#allocation2] sm:$0x3] %v274
    // Predicated region
    $region22: #{dsan_forward.1} parent=1 // pred_check
      _
    $region23: #{dsan_forward.1} parent=1 // pred_check_branch
      %279 = sbr.rel (0) target = $region25
    $region24: #{dsan_forward.1} parent=1 // pred_region
      %281 = vsyncadd [#allocation3], 0
      %s283 = sshll.u32 [#allocation2], 4
      %s284 = int_to_ptr.vmem [resolvable:$true] %s283
      %s285 = sshll.u32 %s5, 4
      %s286 = int_to_ptr.hbm [resolvable:$true] %s285
      %288 = dma.vmem_to_hbm [thread:$0]  %s284, 32, %s286, [#allocation3]
    $region25: #{dsan_forward.1} parent=1 // pred_fallthru
      _
    // Predicated region
    $region26: #{dsan_forward.1} parent=1 // pred_check
      _
    $region27: #{dsan_forward.1} parent=1 // pred_check_branch
      %290 = sbr.rel (0) target = $region29
    $region28: #{dsan_forward.1} parent=1 // pred_region
      %292 = dma.done [#allocation3], 32
    $region29: #{dsan_forward.1} parent=1 // pred_fallthru
      _
    %293 = vsyncpa [#allocation3], 1

</llo_original>
